<compile_context>
chip_gen: v7x
topology: tpu7x:2x2x1
jax: 0.10.0
libtpu: 0.0.40
codegen_flags: <defaults>
</compile_context>

<pallas_src>
import jax
import jax.numpy as jnp
from jax import lax
from jax.experimental import pallas as pl
from jax.experimental.pallas import tpu as pltpu


def _round_up(x, m):
    return ((x + m - 1) // m) * m


# --------------------------------------------------------------------------------------
# Kernel A: fused node projection  proj = nf @ [W_sg | W_du | W_dg | W_su] + b_fused
# --------------------------------------------------------------------------------------
def _node_proj_kernel(nf_ref, w_ref, b_ref, out_ref):
    nf = nf_ref[...].astype(jnp.bfloat16)          # [tn, Fp]
    w = w_ref[...]                                 # [Fp, 4*Fp] bf16
    out_ref[...] = (jnp.dot(nf, w, preferred_element_type=jnp.float32)
                    + b_ref[...]).astype(out_ref.dtype)


# --------------------------------------------------------------------------------------
# Kernel B: edge gating + message passing + node/edge updates (grid over edge tiles)
# --------------------------------------------------------------------------------------
def _edge_kernel(src_ref, dst_ref, dst_row_ref, ef_ref, proj_ref, nf_ref,
                 w_eg_ref, b_eg_ref, n_scale_ref, n_shift_ref, e_scale_ref, e_shift_ref,
                 x_ref, y_ref, acc_ref):
    tile_e = src_ref.shape[0]
    n_pad = proj_ref.shape[0]
    fp = nf_ref.shape[1]
    i = pl.program_id(0)

    @pl.when(i == 0)
    def _init():
        acc_ref[...] = jnp.zeros_like(acc_ref)

    src = src_ref[...]            # [tile_e, 1] int32
    dst = dst_ref[...]            # [tile_e, 1] int32  (padded edges carry dst = n_pad)
    dst_row = dst_row_ref[...]    # [1, tile_e] int32

    # One-hot gather / scatter masks built in VMEM (0/1 exact in bf16).
    node_iota = lax.broadcasted_iota(jnp.int32, (tile_e, n_pad), 1)
    oh_src = jnp.where(src == node_iota, 1.0, 0.0).astype(jnp.bfloat16)     # [tile_e, n_pad]
    oh_dst = jnp.where(dst == node_iota, 1.0, 0.0).astype(jnp.bfloat16)     # [tile_e, n_pad]
    node_iota_t = lax.broadcasted_iota(jnp.int32, (n_pad, tile_e), 0)
    oh_dst_t = jnp.where(dst_row == node_iota_t, 1.0, 0.0).astype(jnp.bfloat16)  # [n_pad, tile_e]

    proj = proj_ref[...]                           # [n_pad, 4*fp] f32
    proj_b = proj.astype(jnp.bfloat16)

    # Gather e_src and Bh at source nodes (one 256-wide matmul), e_dst at destinations.
    src_g = jnp.dot(oh_src, proj_b[:, :2 * fp], preferred_element_type=jnp.float32)
    e_src_g = src_g[:, :fp]
    bh_g = src_g[:, fp:]
    e_dst_g = jnp.dot(oh_dst, proj_b[:, 2 * fp:3 * fp], preferred_element_type=jnp.float32)

    # Edge gate projection.
    eg = jnp.dot(ef_ref[...].astype(jnp.bfloat16), w_eg_ref[...],
                 preferred_element_type=jnp.float32) + b_eg_ref[...]

    m = e_src_g + e_dst_g + eg                     # [tile_e, fp]
    sigma = jax.nn.sigmoid(m)

    # Edge output: y = edge_feats + SiLU(BN(m))   (padded rows sliced off in wrapper)
    y = m * e_scale_ref[...] + e_shift_ref[...]
    y = y * jax.nn.sigmoid(y)
    y_ref[...] = (ef_ref[...] + y).astype(y_ref.dtype)

    # Scatter-add onto destination nodes: acc += D^T @ [sigma*Bh | sigma]  (lane-dense 2*fp).
    msg = jnp.concatenate([sigma * bh_g, sigma], axis=1).astype(jnp.bfloat16)
    acc_ref[...] += jnp.dot(oh_dst_t, msg, preferred_element_type=jnp.float32)

    @pl.when(i == pl.num_programs(0) - 1)
    def _finalize():
        acc = acc_ref[...]
        h = acc[:, :fp] * pl.reciprocal(acc[:, fp:] + 1e-6, approx=True)
        x = proj[:, 3 * fp:] + h                   # src_update(h_i) + aggregated message
        x = x * n_scale_ref[...] + n_shift_ref[...]
        x = x * jax.nn.sigmoid(x)                  # SiLU
        x_ref[...] = (nf_ref[...] + x).astype(x_ref.dtype)


# --------------------------------------------------------------------------------------
# Wrapper
# --------------------------------------------------------------------------------------
def edge_gated_graph_conv(node_feats, edge_feats, src, dst, params, residual=True):
    assert residual, "script exercises the residual=True path"
    N, Fin = node_feats.shape
    E, Fe = edge_feats.shape
    Fout = params["w_src_gate"].shape[1]
    assert Fin == Fout and Fe == Fin, "residual connection requires input == output features"

    f32 = jnp.float32
    Fp = _round_up(Fout, 128)                       # lane-dense feature width
    node_tile = min(_round_up(N, 128), 512)
    N_pad = _round_up(N, node_tile)
    tile_e = min(_round_up(E, 128), 512)
    E_pad = _round_up(E, tile_e)

    # Zero-padded features (padding sliced off at the end).
    nf_pad = jnp.zeros((N_pad, Fp), f32).at[:N, :Fin].set(node_feats)
    ef_pad = jnp.zeros((E_pad, Fp), f32).at[:E, :Fin].set(edge_feats)

    def pad_w(w):
        return jnp.zeros((Fp, Fp), f32).at[:Fin, :Fout].set(w)

    def pad_b(b):
        return jnp.zeros((1, Fp), f32).at[0, :Fout].set(b)

    # Fused node projection: columns = [src_gate | dst_update(Bh) | dst_gate | src_update(Uh)].
    w_fused = jnp.concatenate(
        [pad_w(params["w_src_gate"]), pad_w(params["w_dst_update"]),
         pad_w(params["w_dst_gate"]), pad_w(params["w_src_update"])],
        axis=1).astype(jnp.bfloat16)
    b_fused = jnp.concatenate(
        [pad_b(params["b_src_gate"]), pad_b(params["b_dst_update"]),
         pad_b(params["b_dst_gate"]), pad_b(params["b_src_update"])], axis=1)

    w_eg = pad_w(params["w_edge_gate"]).astype(jnp.bfloat16)
    b_eg = pad_b(params["b_edge_gate"])

    # Fold eval-mode BatchNorm into per-channel scale/shift (padding -> identity).
    eps = 1e-5
    def fold_bn(prefix):
        gamma = jnp.ones((Fp,), f32).at[:Fout].set(params[f"{prefix}_gamma"])
        beta = jnp.zeros((Fp,), f32).at[:Fout].set(params[f"{prefix}_beta"])
        mean = jnp.zeros((Fp,), f32).at[:Fout].set(params[f"{prefix}_mean"])
        var = jnp.ones((Fp,), f32).at[:Fout].set(params[f"{prefix}_var"])
        scale = gamma / jnp.sqrt(var + eps)
        shift = beta - mean * scale
        return scale.reshape(1, Fp), shift.reshape(1, Fp)

    n_scale, n_shift = fold_bn("bn_nodes")
    e_scale, e_shift = fold_bn("bn_edges")

    # Index vectors (padded edges: dst = N_pad -> matches no node -> contributes nothing).
    src_pad = jnp.zeros((E_pad,), jnp.int32).at[:E].set(src.astype(jnp.int32))
    dst_pad = jnp.full((E_pad,), N_pad, jnp.int32).at[:E].set(dst.astype(jnp.int32))
    src_col = src_pad.reshape(E_pad, 1)
    dst_col = dst_pad.reshape(E_pad, 1)
    dst_row = dst_pad.reshape(1, E_pad)

    # ---- Kernel A: fused node projections, tiled over node rows (parallel). ----
    proj = pl.pallas_call(
        _node_proj_kernel,
        out_shape=jax.ShapeDtypeStruct((N_pad, 4 * Fp), f32),
        grid=(N_pad // node_tile,),
        in_specs=[
            pl.BlockSpec((node_tile, Fp), lambda i: (i, 0)),
            pl.BlockSpec((Fp, 4 * Fp), lambda i: (0, 0)),
            pl.BlockSpec((1, 4 * Fp), lambda i: (0, 0)),
        ],
        out_specs=pl.BlockSpec((node_tile, 4 * Fp), lambda i: (i, 0)),
        compiler_params=pltpu.CompilerParams(dimension_semantics=("parallel",)),
    )(nf_pad, w_fused, b_fused)

    # ---- Kernel B: edge tiles (reduction axis) with node accumulator scratch. ----
    x_pad, y_pad = pl.pallas_call(
        _edge_kernel,
        out_shape=(
            jax.ShapeDtypeStruct((N_pad, Fp), f32),
            jax.ShapeDtypeStruct((E_pad, Fp), f32),
        ),
        grid=(E_pad // tile_e,),
        in_specs=[
            pl.BlockSpec((tile_e, 1), lambda i: (i, 0)),      # src (column layout)
            pl.BlockSpec((tile_e, 1), lambda i: (i, 0)),      # dst (column layout)
            pl.BlockSpec((1, tile_e), lambda i: (0, i)),      # dst (row layout, for scatter)
            pl.BlockSpec((tile_e, Fp), lambda i: (i, 0)),     # edge features tile
            pl.BlockSpec((N_pad, 4 * Fp), lambda i: (0, 0)),  # node projections (resident)
            pl.BlockSpec((N_pad, Fp), lambda i: (0, 0)),      # node features (residual)
            pl.BlockSpec((Fp, Fp), lambda i: (0, 0)),         # w_edge_gate (bf16)
            pl.BlockSpec((1, Fp), lambda i: (0, 0)),          # b_edge_gate
            pl.BlockSpec((1, Fp), lambda i: (0, 0)),          # bn_nodes scale
            pl.BlockSpec((1, Fp), lambda i: (0, 0)),          # bn_nodes shift
            pl.BlockSpec((1, Fp), lambda i: (0, 0)),          # bn_edges scale
            pl.BlockSpec((1, Fp), lambda i: (0, 0)),          # bn_edges shift
        ],
        out_specs=(
            pl.BlockSpec((N_pad, Fp), lambda i: (0, 0)),      # node output (finalized at end)
            pl.BlockSpec((tile_e, Fp), lambda i: (i, 0)),     # edge output tile
        ),
        scratch_shapes=[pltpu.VMEM((N_pad, 2 * Fp), jnp.float32)],  # [sum_sigma_h | sum_sigma]
        compiler_params=pltpu.CompilerParams(dimension_semantics=("arbitrary",)),
    )(src_col, dst_col, dst_row, ef_pad, proj, nf_pad,
      w_eg, b_eg, n_scale, n_shift, e_scale, e_shift)

    return x_pad[:N, :Fout], y_pad[:E, :Fout]


# --------------------------------------------------------------------------------------
# Pure-JAX reference (f32) for validation.
# --------------------------------------------------------------------------------------
def _reference(node_feats, edge_feats, src, dst, params):
    eps = 1e-5
    lin = lambda x, w, b: x @ w + b
    e_src = lin(node_feats, params["w_src_gate"], params["b_src_gate"])
    e_dst = lin(node_feats, params["w_dst_gate"], params["b_dst_gate"])
    m = e_src[src] + e_dst[dst] + lin(edge_feats, params["w_edge_gate"], params["b_edge_gate"])
    sigma = jax.nn.sigmoid(m)
    bh = lin(node_feats, params["w_dst_update"], params["b_dst_update"])
    N, F = node_feats.shape[0], bh.shape[1]
    sum_sigma_h = jnp.zeros((N, F), jnp.float32).at[dst].add(sigma * bh[src])
    sum_sigma = jnp.zeros((N, F), jnp.float32).at[dst].add(sigma)
    h = sum_sigma_h / (sum_sigma + 1e-6)

    def bn(x, p):
        scale = params[f"{p}_gamma"] / jnp.sqrt(params[f"{p}_var"] + eps)
        return (x - params[f"{p}_mean"]) * scale + params[f"{p}_beta"]

    x = lin(node_feats, params["w_src_update"], params["b_src_update"]) + h
    x = jax.nn.silu(bn(x, "bn_nodes"))
    y = jax.nn.silu(bn(m, "bn_edges"))
    return node_feats + x, edge_feats + y


def _init_params(key, fin, fout):
    """Deterministic PyTorch-style init (uniform +/- 1/sqrt(fan_in); BN defaults)."""
    names = ["src_gate", "dst_gate", "edge_gate", "dst_update", "src_update"]
    keys = jax.random.split(key, 2 * len(names))
    bound = 1.0 / jnp.sqrt(jnp.float32(fin))
    params = {}
    for i, name in enumerate(names):
        params[f"w_{name}"] = jax.random.uniform(
            keys[2 * i], (fin, fout), jnp.float32, -bound, bound)
        params[f"b_{name}"] = jax.random.uniform(
            keys[2 * i + 1], (fout,), jnp.float32, -bound, bound)
    for bn in ["bn_nodes", "bn_edges"]:
        params[f"{bn}_gamma"] = jnp.ones((fout,), jnp.float32)
        params[f"{bn}_beta"] = jnp.zeros((fout,), jnp.float32)
        params[f"{bn}_mean"] = jnp.zeros((fout,), jnp.float32)
        params[f"{bn}_var"] = jnp.ones((fout,), jnp.float32)
    return params


if __name__ == "__main__":
    key = jax.random.PRNGKey(0)
    k_nf, k_ef, k_src, k_dst, k_par = jax.random.split(key, 5)

    N, E, FIN, FOUT = 32, 64, 32, 32   # small graph: 32 nodes, 64 edges, hidden 32

    node_feats = jax.random.normal(k_nf, (N, FIN), jnp.float32)
    edge_feats = jax.random.normal(k_ef, (E, FIN), jnp.float32)
    src = jax.random.randint(k_src, (E,), 0, N, jnp.int32)
    dst = jax.random.randint(k_dst, (E,), 0, N, jnp.int32)

    params = _init_params(k_par, FIN, FOUT)

    x_out, y_out = edge_gated_graph_conv(node_feats, edge_feats, src, dst, params)
    jax.block_until_ready((x_out, y_out))

    assert x_out.shape == (N, FOUT) and y_out.shape == (E, FOUT)
    assert bool(jnp.all(jnp.isfinite(x_out))) and bool(jnp.all(jnp.isfinite(y_out)))

    # Validate against pure-JAX f32 reference (loose tolerance: bf16 MXU operands
    # + approx reciprocal in the kernel).
    x_ref, y_ref = _reference(node_feats, edge_feats, src, dst, params)
    assert float(jnp.max(jnp.abs(x_out - x_ref))) < 0.3
    assert float(jnp.max(jnp.abs(y_out - y_ref))) < 0.3

    print("KERNEL_OK")
</pallas_src>

<mosaic_0001>
module attributes {stable_mosaic.version = 11 : i64} {
  func.func @_node_proj_kernel(%arg0: i32, %arg1: memref<128x128xf32, #tpu.memory_space<vmem>>, %arg2: memref<128x512xbf16, #tpu.memory_space<vmem>>, %arg3: memref<1x512xf32, #tpu.memory_space<vmem>>, %arg4: memref<128x512xf32, #tpu.memory_space<vmem>>) attributes {dimension_semantics = [#tpu.dimension_semantics<parallel>], iteration_bounds = array<i64: 1>, scalar_prefetch = 0 : i64, scratch_operands = 0 : i64, tpu.core_type = #tpu.core_type<tc>, window_params = [{transform_indices = @transform_0, window_bounds = array<i64: 128, 128>}, {pipeline_mode = #tpu.pipeline_mode<synchronous>, transform_indices = @transform_1, window_bounds = array<i64: 128, 512>}, {pipeline_mode = #tpu.pipeline_mode<synchronous>, transform_indices = @transform_2, window_bounds = array<i64: 1, 512>}, {transform_indices = @transform_3, window_bounds = array<i64: 128, 512>}]} {
    %c0 = arith.constant 0 : index
    %c0_0 = arith.constant 0 : index
    %0 = vector.load %arg1[%c0, %c0_0] : memref<128x128xf32, #tpu.memory_space<vmem>>, vector<128x128xf32>
    %1 = arith.truncf %0 : vector<128x128xf32> to vector<128x128xbf16>
    %c0_1 = arith.constant 0 : index
    %c0_2 = arith.constant 0 : index
    %2 = vector.load %arg2[%c0_1, %c0_2] : memref<128x512xbf16, #tpu.memory_space<vmem>>, vector<128x512xbf16>
    %cst = arith.constant dense<0.000000e+00> : vector<128x512xf32>
    %3 = tpu.matmul %1, %2, %cst {dimension_numbers = #tpu.dot_dimension_numbers<[1], [0], [0], [1], [0, 0, 1, 1], [], []>} : vector<128x128xbf16>, vector<128x512xbf16>, vector<128x512xf32> -> vector<128x512xf32>
    %c0_3 = arith.constant 0 : index
    %c0_4 = arith.constant 0 : index
    %4 = vector.load %arg3[%c0_3, %c0_4] : memref<1x512xf32, #tpu.memory_space<vmem>>, vector<1x512xf32>
    %5 = vector.broadcast %4 : vector<1x512xf32> to vector<128x512xf32>
    %6 = arith.addf %3, %5 : vector<128x512xf32>
    %c0_5 = arith.constant 0 : index
    %c0_6 = arith.constant 0 : index
    %7 = vector.load %arg4[%c0_5, %c0_6] : memref<128x512xf32, #tpu.memory_space<vmem>>, vector<128x512xf32>
    tpu.vector_store %arg4[%c0_5, %c0_6], %6 {strides = array<i32>} : memref<128x512xf32, #tpu.memory_space<vmem>>, vector<128x512xf32>,
    return
  }
  func.func @transform_0(%arg0: i32) -> (i32, i32) {
    %c0_i32 = arith.constant 0 : i32
    %c0_i32_0 = arith.constant 0 : i32
    return %arg0, %c0_i32 : i32, i32
  }
  func.func @transform_1(%arg0: i32) -> (i32, i32) {
    %c0_i32 = arith.constant 0 : i32
    %c0_i32_0 = arith.constant 0 : i32
    %c0_i32_1 = arith.constant 0 : i32
    return %c0_i32, %c0_i32_0 : i32, i32
  }
  func.func @transform_2(%arg0: i32) -> (i32, i32) {
    %c0_i32 = arith.constant 0 : i32
    %c0_i32_0 = arith.constant 0 : i32
    %c0_i32_1 = arith.constant 0 : i32
    return %c0_i32, %c0_i32_0 : i32, i32
  }
  func.func @transform_3(%arg0: i32) -> (i32, i32) {
    %c0_i32 = arith.constant 0 : i32
    %c0_i32_0 = arith.constant 0 : i32
    return %arg0, %c0_i32 : i32, i32
  }
}

</mosaic_0001>

<llo_original>
// kernel: tpu_custom_call.1
$region0: #{tpu_custom_call.1}
  #allocation0 [shape = 'u32[]', space=smem, size = 0x4, offset = 0x4, fixed_abs, tag = 'smem constant byte address 0x4 - core index']
  #allocation1 [shape = 'u32[144,128]{1,0:T(1,128)}', space=vmem, size = 0x12000, scoped, tag = 'internal scratch']
  %s0 = inlined_call_operand.hbm [shape: f32[128,128], index: 0, kind: input, shape index: {}]
  %s1 = inlined_call_operand.hbm [shape: bf16[128,512], index: 1, kind: input, shape index: {}]
  %s2 = inlined_call_operand.vmem [shape: f32[1,512], index: 2, kind: input, shape index: {}]
  %s3 = inlined_call_operand.hbm [shape: f32[128,512], index: 3, kind: output, shape index: {}]
  %s4 = sld [smem:[#allocation0]]
  $region30: #{tpu_custom_call.1} parent=0
    _
  %s6 = ssub.s32 1, %s4
  %s7 = scalar_select 0, %s6, %s4
  $region1: #{tpu_custom_call.1} parent=0
    #allocation2 [shape = 'u8[65536]{0}', space=vmem, size = 0x10000, scoped, tag = 'input window, operand 0, single buffered']
    #allocation3 [shape = 's32[1]{0}', space=sflag, size = 0x4, scoped, tag = 'scoped memory for tpu_custom_call.1']
    #allocation4 [shape = 's32[1]{0}', space=sflag, size = 0x4, scoped, tag = 'scoped memory for tpu_custom_call.1']
    #allocation5 [shape = 'u8[131072]{0}', space=vmem, size = 0x20000, scoped, tag = 'input window, operand 1, single buffered']
    #allocation6 [shape = 's32[1]{0}', space=sflag, size = 0x4, scoped, tag = 'scoped memory for tpu_custom_call.1']
    #allocation7 [shape = 'u8[262144]{0}', space=vmem, size = 0x40000, scoped, tag = 'output window, operand 0, single buffered']
    %8 = vsyncpa [#allocation3], 0
    %9 = vsyncpa [#allocation6], 0
    %10 = vsyncpa [#allocation4], 0
    // Predicated region
    $region2: #{tpu_custom_call.1} parent=1 // pred_check
      _
    $region3: #{tpu_custom_call.1} parent=1 // pred_check_branch
      %12 = sbr.rel (0) target = $region5
    $region4: #{tpu_custom_call.1} parent=1 // pred_region
      %s14 = ssub.s32 2048, 2048
      %15 = vsyncadd [#allocation3], %s14
      %s16 = sshll.u32 [#allocation2], 4
      %s17 = int_to_ptr.vmem [resolvable:$true] %s16
      %22 = dma.hbm_to_vmem [thread:$0]  %s0, 2048, %s17, [#allocation3], 128, 128, 8
    $region5: #{tpu_custom_call.1} parent=1 // pred_fallthru
      _
    // Predicated region
    $region6: #{tpu_custom_call.1} parent=1 // pred_check
      _
    $region7: #{tpu_custom_call.1} parent=1 // pred_check_branch
      %24 = sbr.rel (0) target = $region9
    $region8: #{tpu_custom_call.1} parent=1 // pred_region
      %s26 = ssub.s32 4096, 4096
      %27 = vsyncadd [#allocation6], %s26
      %s28 = sshll.u32 [#allocation5], 4
      %s29 = int_to_ptr.vmem [resolvable:$true] %s28
      %34 = dma.hbm_to_vmem [thread:$0]  %s1, 4096, %s29, [#allocation6], 256, 256, 16
    $region9: #{tpu_custom_call.1} parent=1 // pred_fallthru
      _
    // Predicated region
    $region10: #{tpu_custom_call.1} parent=1 // pred_check
      _
    $region11: #{tpu_custom_call.1} parent=1 // pred_check_branch
      %36 = sbr.rel (0) target = $region13
    $region12: #{tpu_custom_call.1} parent=1 // pred_region
      _
    $region13: #{tpu_custom_call.1} parent=1 // pred_fallthru
      _
    // Predicated region
    $region14: #{tpu_custom_call.1} parent=1 // pred_check
      _
    $region15: #{tpu_custom_call.1} parent=1 // pred_check_branch
      %38 = sbr.rel (0) target = $region17
    $region16: #{tpu_custom_call.1} parent=1 // pred_region
      %39 = dma.done [#allocation3], 2048
    $region17: #{tpu_custom_call.1} parent=1 // pred_fallthru
      _
    // Predicated region
    $region18: #{tpu_custom_call.1} parent=1 // pred_check
      _
    $region19: #{tpu_custom_call.1} parent=1 // pred_check_branch
      %41 = sbr.rel (0) target = $region21
    $region20: #{tpu_custom_call.1} parent=1 // pred_region
      %42 = dma.done [#allocation6], 4096
    $region21: #{tpu_custom_call.1} parent=1 // pred_fallthru
      _
    %v44 = vld [vmem:[#allocation2] sm:$0xff]
    %v45 = vld [vmem:[#allocation2 + $0x8] sm:$0xff]
    %v46 = vld [vmem:[#allocation2 + $0x10] sm:$0xff]
    %v47 = vld [vmem:[#allocation2 + $0x18] sm:$0xff]
    %v48 = vld [vmem:[#allocation2 + $0x20] sm:$0xff]
    %v49 = vld [vmem:[#allocation2 + $0x28] sm:$0xff]
    %v50 = vld [vmem:[#allocation2 + $0x30] sm:$0xff]
    %v51 = vld [vmem:[#allocation2 + $0x38] sm:$0xff]
    %v52 = vld [vmem:[#allocation2 + $0x40] sm:$0xff]
    %v53 = vld [vmem:[#allocation2 + $0x48] sm:$0xff]
    %v54 = vld [vmem:[#allocation2 + $0x50] sm:$0xff]
    %v55 = vld [vmem:[#allocation2 + $0x58] sm:$0xff]
    %v56 = vld [vmem:[#allocation2 + $0x60] sm:$0xff]
    %v57 = vld [vmem:[#allocation2 + $0x68] sm:$0xff]
    %v58 = vld [vmem:[#allocation2 + $0x70] sm:$0xff]
    %v59 = vld [vmem:[#allocation2 + $0x78] sm:$0xff]
    %v60 = vpack.c.bf16 %v45, %v44
    %v61 = vpack.c.bf16 %v47, %v46
    %v62 = vpack.c.bf16 %v49, %v48
    %v63 = vpack.c.bf16 %v51, %v50
    %v64 = vpack.c.bf16 %v53, %v52
    %v65 = vpack.c.bf16 %v55, %v54
    %v66 = vpack.c.bf16 %v57, %v56
    %v67 = vpack.c.bf16 %v59, %v58
    %v68 = vld [vmem:[#allocation5] sm:$0xff]
    %v69 = vld [vmem:[#allocation5 + $0x8] sm:$0xff]
    %v70 = vld [vmem:[#allocation5 + $0x10] sm:$0xff]
    %v71 = vld [vmem:[#allocation5 + $0x18] sm:$0xff]
    %v72 = vld [vmem:[#allocation5 + $0x20] sm:$0xff]
    %v73 = vld [vmem:[#allocation5 + $0x28] sm:$0xff]
    %v74 = vld [vmem:[#allocation5 + $0x30] sm:$0xff]
    %v75 = vld [vmem:[#allocation5 + $0x38] sm:$0xff]
    %v76 = vld [vmem:[#allocation5 + $0x40] sm:$0xff]
    %v77 = vld [vmem:[#allocation5 + $0x48] sm:$0xff]
    %v78 = vld [vmem:[#allocation5 + $0x50] sm:$0xff]
    %v79 = vld [vmem:[#allocation5 + $0x58] sm:$0xff]
    %v80 = vld [vmem:[#allocation5 + $0x60] sm:$0xff]
    %v81 = vld [vmem:[#allocation5 + $0x68] sm:$0xff]
    %v82 = vld [vmem:[#allocation5 + $0x70] sm:$0xff]
    %v83 = vld [vmem:[#allocation5 + $0x78] sm:$0xff]
    %v84 = vld [vmem:[#allocation5 + $0x80] sm:$0xff]
    %v85 = vld [vmem:[#allocation5 + $0x88] sm:$0xff]
    %v86 = vld [vmem:[#allocation5 + $0x90] sm:$0xff]
    %v87 = vld [vmem:[#allocation5 + $0x98] sm:$0xff]
    %v88 = vld [vmem:[#allocation5 + $0xa0] sm:$0xff]
    %v89 = vld [vmem:[#allocation5 + $0xa8] sm:$0xff]
    %v90 = vld [vmem:[#allocation5 + $0xb0] sm:$0xff]
    %v91 = vld [vmem:[#allocation5 + $0xb8] sm:$0xff]
    %v92 = vld [vmem:[#allocation5 + $0xc0] sm:$0xff]
    %v93 = vld [vmem:[#allocation5 + $0xc8] sm:$0xff]
    %v94 = vld [vmem:[#allocation5 + $0xd0] sm:$0xff]
    %v95 = vld [vmem:[#allocation5 + $0xd8] sm:$0xff]
    %v96 = vld [vmem:[#allocation5 + $0xe0] sm:$0xff]
    %v97 = vld [vmem:[#allocation5 + $0xe8] sm:$0xff]
    %v98 = vld [vmem:[#allocation5 + $0xf0] sm:$0xff]
    %v99 = vld [vmem:[#allocation5 + $0xf8] sm:$0xff]
    %v100 = vld [vmem:[%s2] sm:$0xf]
    %v102 = vlaneseq
    %v103 = vshrl.u32 %v102, 7
    %v104 = vsub.s32 0, %v103
    %v105 = vrot.slane %v100, %v104
    %v106 = vlaneseq
    %v107 = vshrl.u32 %v106, 7
    %v108 = vsub.s32 1, %v107
    %v109 = vrot.slane %v100, %v108
    %v110 = vlaneseq
    %v111 = vshrl.u32 %v110, 7
    %v112 = vsub.s32 2, %v111
    %v113 = vrot.slane %v100, %v112
    %v114 = vlaneseq
    %v115 = vshrl.u32 %v114, 7
    %v116 = vsub.s32 3, %v115
    %v117 = vrot.slane %v100, %v116
    %v154 = vunpack.c.l.b16 %v68
    %v155 = vunpack.c.h.b16 %v68
    %v156 = vunpack.c.l.b16 %v69
    %v157 = vunpack.c.h.b16 %v69
    %v158 = vunpack.c.l.b16 %v70
    %v159 = vunpack.c.h.b16 %v70
    %v160 = vunpack.c.l.b16 %v71
    %v161 = vunpack.c.h.b16 %v71
    %v162 = vunpack.c.l.b16 %v72
    %v163 = vunpack.c.h.b16 %v72
    %v164 = vunpack.c.l.b16 %v73
    %v165 = vunpack.c.h.b16 %v73
    %v166 = vunpack.c.l.b16 %v74
    %v167 = vunpack.c.h.b16 %v74
    %v168 = vunpack.c.l.b16 %v75
    %v169 = vunpack.c.h.b16 %v75
    %v170 = vunpack.c.l.b16 %v76
    %v171 = vunpack.c.h.b16 %v76
    %v172 = vunpack.c.l.b16 %v77
    %v173 = vunpack.c.h.b16 %v77
    %v174 = vunpack.c.l.b16 %v78
    %v175 = vunpack.c.h.b16 %v78
    %v176 = vunpack.c.l.b16 %v79
    %v177 = vunpack.c.h.b16 %v79
    %v178 = vunpack.c.l.b16 %v80
    %v179 = vunpack.c.h.b16 %v80
    %v180 = vunpack.c.l.b16 %v81
    %v181 = vunpack.c.h.b16 %v81
    %v182 = vunpack.c.l.b16 %v82
    %v183 = vunpack.c.h.b16 %v82
    %v184 = vunpack.c.l.b16 %v83
    %v185 = vunpack.c.h.b16 %v83
    %v186 = vunpack.c.l.b16 %v84
    %v187 = vunpack.c.h.b16 %v84
    %v188 = vunpack.c.l.b16 %v85
    %v189 = vunpack.c.h.b16 %v85
    %v190 = vunpack.c.l.b16 %v86
    %v191 = vunpack.c.h.b16 %v86
    %v192 = vunpack.c.l.b16 %v87
    %v193 = vunpack.c.h.b16 %v87
    %v194 = vunpack.c.l.b16 %v88
    %v195 = vunpack.c.h.b16 %v88
    %v196 = vunpack.c.l.b16 %v89
    %v197 = vunpack.c.h.b16 %v89
    %v198 = vunpack.c.l.b16 %v90
    %v199 = vunpack.c.h.b16 %v90
    %v200 = vunpack.c.l.b16 %v91
    %v201 = vunpack.c.h.b16 %v91
    %v202 = vunpack.c.l.b16 %v92
    %v203 = vunpack.c.h.b16 %v92
    %v204 = vunpack.c.l.b16 %v93
    %v205 = vunpack.c.h.b16 %v93
    %v206 = vunpack.c.l.b16 %v94
    %v207 = vunpack.c.h.b16 %v94
    %v208 = vunpack.c.l.b16 %v95
    %v209 = vunpack.c.h.b16 %v95
    %v210 = vunpack.c.l.b16 %v96
    %v211 = vunpack.c.h.b16 %v96
    %v212 = vunpack.c.l.b16 %v97
    %v213 = vunpack.c.h.b16 %v97
    %v214 = vunpack.c.l.b16 %v98
    %v215 = vunpack.c.h.b16 %v98
    %v216 = vunpack.c.l.b16 %v99
    %v217 = vunpack.c.h.b16 %v99
    %v218 = vpack.c.b16 %v158, %v154
    %v219 = vpack.c.b16 %v159, %v155
    %v220 = vpack.c.b16 %v160, %v156
    %v221 = vpack.c.b16 %v161, %v157
    %v222 = vpack.c.b16 %v166, %v162
    %v223 = vpack.c.b16 %v167, %v163
    %v224 = vpack.c.b16 %v168, %v164
    %v225 = vpack.c.b16 %v169, %v165
    %v226 = vpack.c.b16 %v174, %v170
    %v227 = vpack.c.b16 %v175, %v171
    %v228 = vpack.c.b16 %v176, %v172
    %v229 = vpack.c.b16 %v177, %v173
    %v230 = vpack.c.b16 %v182, %v178
    %v231 = vpack.c.b16 %v183, %v179
    %v232 = vpack.c.b16 %v184, %v180
    %v233 = vpack.c.b16 %v185, %v181
    %v234 = vpack.c.b16 %v190, %v186
    %v235 = vpack.c.b16 %v191, %v187
    %v236 = vpack.c.b16 %v192, %v188
    %v237 = vpack.c.b16 %v193, %v189
    %v238 = vpack.c.b16 %v198, %v194
    %v239 = vpack.c.b16 %v199, %v195
    %v240 = vpack.c.b16 %v200, %v196
    %v241 = vpack.c.b16 %v201, %v197
    %v242 = vpack.c.b16 %v206, %v202
    %v243 = vpack.c.b16 %v207, %v203
    %v244 = vpack.c.b16 %v208, %v204
    %v245 = vpack.c.b16 %v209, %v205
    %v246 = vpack.c.b16 %v214, %v210
    %v247 = vpack.c.b16 %v215, %v211
    %v248 = vpack.c.b16 %v216, %v212
    %v249 = vpack.c.b16 %v217, %v213
    %282 = vmatprep.subr.bf16.mxu0 %v219
    %283 = vmatpush1.bf16.msra.mxu0 %v218
    %284 = vmatprep.subr.bf16.mxu0 %v223
    %285 = vmatpush1.bf16.msra.mxu0 %v222
    %286 = vmatprep.subr.bf16.mxu0 %v227
    %287 = vmatpush1.bf16.msra.mxu0 %v226
    %288 = vmatprep.subr.bf16.mxu0 %v231
    %289 = vmatpush1.bf16.msra.mxu0 %v230
    %290 = vmatprep.subr.bf16.mxu0 %v235
    %291 = vmatpush1.bf16.msra.mxu0 %v234
    %292 = vmatprep.subr.bf16.mxu0 %v239
    %293 = vmatpush1.bf16.msra.mxu0 %v238
    %294 = vmatprep.subr.bf16.mxu0 %v243
    %295 = vmatpush1.bf16.msra.mxu0 %v242
    %296 = vmatprep.subr.bf16.mxu0 %v247
    %297 = vmatpush1.bf16.msra.mxu0 %v246
    %298 = vmatprep.subr.bf16.mxu0 0
    %299 = vmatpush1.bf16.msra.mxu0 0
    %300 = vmatprep.subr.bf16.mxu0 0
    %301 = vmatpush1.bf16.msra.mxu0 0
    %302 = vmatprep.subr.bf16.mxu0 0
    %303 = vmatpush1.bf16.msra.mxu0 0
    %304 = vmatprep.subr.bf16.mxu0 0
    %305 = vmatpush1.bf16.msra.mxu0 0
    %306 = vmatprep.subr.bf16.mxu0 0
    %307 = vmatpush1.bf16.msra.mxu0 0
    %308 = vmatprep.subr.bf16.mxu0 0
    %309 = vmatpush1.bf16.msra.mxu0 0
    %310 = vmatprep.subr.bf16.mxu0 0
    %311 = vmatpush1.bf16.msra.mxu0 0
    %312 = vmatprep.subr.bf16.mxu0 0
    %313 = vmatpush1.bf16.msra.mxu0 0
    %314 = vmatprep.mubr.bf16.mxu0 0
    %315 = vmatmul.mubr.bf16.gmra.mrb[0].mxu0 %v60
    %v316 = vpop.f32.mrb[0].mxu0
    %v317 = vadd.f32 %v105, %v316
    %v318 = vpop.f32.mrb[0].mxu0
    %v319 = vadd.f32 %v109, %v318
    %v320 = vpop.f32.mrb[0].mxu0
    %v321 = vadd.f32 %v105, %v320
    %v322 = vpop.f32.mrb[0].mxu0
    %v323 = vadd.f32 %v109, %v322
    %324 = vmatprep.mubr.bf16.mxu0 0
    %325 = vmatmul.mubr.bf16.gmra.mrb[0].mxu0 %v61
    %v326 = vpop.f32.mrb[0].mxu0
    %v327 = vadd.f32 %v105, %v326
    %v328 = vpop.f32.mrb[0].mxu0
    %v329 = vadd.f32 %v109, %v328
    %v330 = vpop.f32.mrb[0].mxu0
    %v331 = vadd.f32 %v105, %v330
    %v332 = vpop.f32.mrb[0].mxu0
    %v333 = vadd.f32 %v109, %v332
    %334 = vmatprep.mubr.bf16.mxu0 0
    %335 = vmatmul.mubr.bf16.gmra.mrb[0].mxu0 %v62
    %v336 = vpop.f32.mrb[0].mxu0
    %v337 = vadd.f32 %v105, %v336
    %v338 = vpop.f32.mrb[0].mxu0
    %v339 = vadd.f32 %v109, %v338
    %v340 = vpop.f32.mrb[0].mxu0
    %v341 = vadd.f32 %v105, %v340
    %v342 = vpop.f32.mrb[0].mxu0
    %v343 = vadd.f32 %v109, %v342
    %344 = vmatprep.mubr.bf16.mxu0 0
    %345 = vmatmul.mubr.bf16.gmra.mrb[0].mxu0 %v63
    %v346 = vpop.f32.mrb[0].mxu0
    %v347 = vadd.f32 %v105, %v346
    %v348 = vpop.f32.mrb[0].mxu0
    %v349 = vadd.f32 %v109, %v348
    %v350 = vpop.f32.mrb[0].mxu0
    %v351 = vadd.f32 %v105, %v350
    %v352 = vpop.f32.mrb[0].mxu0
    %v353 = vadd.f32 %v109, %v352
    %354 = vmatprep.mubr.bf16.mxu0 0
    %355 = vmatmul.mubr.bf16.gmra.mrb[0].mxu0 %v64
    %v356 = vpop.f32.mrb[0].mxu0
    %v357 = vadd.f32 %v105, %v356
    %v358 = vpop.f32.mrb[0].mxu0
    %v359 = vadd.f32 %v109, %v358
    %v360 = vpop.f32.mrb[0].mxu0
    %v361 = vadd.f32 %v105, %v360
    %v362 = vpop.f32.mrb[0].mxu0
    %v363 = vadd.f32 %v109, %v362
    %364 = vmatprep.mubr.bf16.mxu0 0
    %365 = vmatmul.mubr.bf16.gmra.mrb[0].mxu0 %v65
    %v366 = vpop.f32.mrb[0].mxu0
    %v367 = vadd.f32 %v105, %v366
    %v368 = vpop.f32.mrb[0].mxu0
    %v369 = vadd.f32 %v109, %v368
    %v370 = vpop.f32.mrb[0].mxu0
    %v371 = vadd.f32 %v105, %v370
    %v372 = vpop.f32.mrb[0].mxu0
    %v373 = vadd.f32 %v109, %v372
    %374 = vmatprep.mubr.bf16.mxu0 0
    %375 = vmatmul.mubr.bf16.gmra.mrb[0].mxu0 %v66
    %v376 = vpop.f32.mrb[0].mxu0
    %v377 = vadd.f32 %v105, %v376
    %v378 = vpop.f32.mrb[0].mxu0
    %v379 = vadd.f32 %v109, %v378
    %v380 = vpop.f32.mrb[0].mxu0
    %v381 = vadd.f32 %v105, %v380
    %v382 = vpop.f32.mrb[0].mxu0
    %v383 = vadd.f32 %v109, %v382
    %384 = vmatprep.mubr.bf16.mxu0 0
    %385 = vmatmul.mubr.bf16.gmra.mrb[0].mxu0 %v67
    %v386 = vpop.f32.mrb[0].mxu0
    %v387 = vadd.f32 %v105, %v386
    %v388 = vpop.f32.mrb[0].mxu0
    %v389 = vadd.f32 %v109, %v388
    %v390 = vpop.f32.mrb[0].mxu0
    %v391 = vadd.f32 %v105, %v390
    %v392 = vpop.f32.mrb[0].mxu0
    %v393 = vadd.f32 %v109, %v392
    %394 = vdwg.mxu0
    %395 = vmatprep.subr.bf16.mxu0 %v221
    %396 = vmatpush1.bf16.msra.mxu0 %v220
    %397 = vmatprep.subr.bf16.mxu0 %v225
    %398 = vmatpush1.bf16.msra.mxu0 %v224
    %399 = vmatprep.subr.bf16.mxu0 %v229
    %400 = vmatpush1.bf16.msra.mxu0 %v228
    %401 = vmatprep.subr.bf16.mxu0 %v233
    %402 = vmatpush1.bf16.msra.mxu0 %v232
    %403 = vmatprep.subr.bf16.mxu0 %v237
    %404 = vmatpush1.bf16.msra.mxu0 %v236
    %405 = vmatprep.subr.bf16.mxu0 %v241
    %406 = vmatpush1.bf16.msra.mxu0 %v240
    %407 = vmatprep.subr.bf16.mxu0 %v245
    %408 = vmatpush1.bf16.msra.mxu0 %v244
    %409 = vmatprep.subr.bf16.mxu0 %v249
    %410 = vmatpush1.bf16.msra.mxu0 %v248
    %411 = vmatprep.subr.bf16.mxu0 0
    %412 = vmatpush1.bf16.msra.mxu0 0
    %413 = vmatprep.subr.bf16.mxu0 0
    %414 = vmatpush1.bf16.msra.mxu0 0
    %415 = vmatprep.subr.bf16.mxu0 0
    %416 = vmatpush1.bf16.msra.mxu0 0
    %417 = vmatprep.subr.bf16.mxu0 0
    %418 = vmatpush1.bf16.msra.mxu0 0
    %419 = vmatprep.subr.bf16.mxu0 0
    %420 = vmatpush1.bf16.msra.mxu0 0
    %421 = vmatprep.subr.bf16.mxu0 0
    %422 = vmatpush1.bf16.msra.mxu0 0
    %423 = vmatprep.subr.bf16.mxu0 0
    %424 = vmatpush1.bf16.msra.mxu0 0
    %425 = vmatprep.subr.bf16.mxu0 0
    %426 = vmatpush1.bf16.msra.mxu0 0
    %427 = vmatprep.mubr.bf16.mxu0 0
    %428 = vmatmul.mubr.bf16.gmra.mrb[0].mxu0 %v60
    %v429 = vpop.f32.mrb[0].mxu0
    %v430 = vadd.f32 %v113, %v429
    %v431 = vpop.f32.mrb[0].mxu0
    %v432 = vadd.f32 %v117, %v431
    %v433 = vpop.f32.mrb[0].mxu0
    %v434 = vadd.f32 %v113, %v433
    %v435 = vpop.f32.mrb[0].mxu0
    %v436 = vadd.f32 %v117, %v435
    %437 = vmatprep.mubr.bf16.mxu0 0
    %438 = vmatmul.mubr.bf16.gmra.mrb[0].mxu0 %v61
    %v439 = vpop.f32.mrb[0].mxu0
    %v440 = vadd.f32 %v113, %v439
    %v441 = vpop.f32.mrb[0].mxu0
    %v442 = vadd.f32 %v117, %v441
    %v443 = vpop.f32.mrb[0].mxu0
    %v444 = vadd.f32 %v113, %v443
    %v445 = vpop.f32.mrb[0].mxu0
    %v446 = vadd.f32 %v117, %v445
    %447 = vmatprep.mubr.bf16.mxu0 0
    %448 = vmatmul.mubr.bf16.gmra.mrb[0].mxu0 %v62
    %v449 = vpop.f32.mrb[0].mxu0
    %v450 = vadd.f32 %v113, %v449
    %v451 = vpop.f32.mrb[0].mxu0
    %v452 = vadd.f32 %v117, %v451
    %v453 = vpop.f32.mrb[0].mxu0
    %v454 = vadd.f32 %v113, %v453
    %v455 = vpop.f32.mrb[0].mxu0
    %v456 = vadd.f32 %v117, %v455
    %457 = vmatprep.mubr.bf16.mxu0 0
    %458 = vmatmul.mubr.bf16.gmra.mrb[0].mxu0 %v63
    %v459 = vpop.f32.mrb[0].mxu0
    %v460 = vadd.f32 %v113, %v459
    %v461 = vpop.f32.mrb[0].mxu0
    %v462 = vadd.f32 %v117, %v461
    %v463 = vpop.f32.mrb[0].mxu0
    %v464 = vadd.f32 %v113, %v463
    %v465 = vpop.f32.mrb[0].mxu0
    %v466 = vadd.f32 %v117, %v465
    %467 = vmatprep.mubr.bf16.mxu0 0
    %468 = vmatmul.mubr.bf16.gmra.mrb[0].mxu0 %v64
    %v469 = vpop.f32.mrb[0].mxu0
    %v470 = vadd.f32 %v113, %v469
    %v471 = vpop.f32.mrb[0].mxu0
    %v472 = vadd.f32 %v117, %v471
    %v473 = vpop.f32.mrb[0].mxu0
    %v474 = vadd.f32 %v113, %v473
    %v475 = vpop.f32.mrb[0].mxu0
    %v476 = vadd.f32 %v117, %v475
    %477 = vmatprep.mubr.bf16.mxu0 0
    %478 = vmatmul.mubr.bf16.gmra.mrb[0].mxu0 %v65
    %v479 = vpop.f32.mrb[0].mxu0
    %v480 = vadd.f32 %v113, %v479
    %v481 = vpop.f32.mrb[0].mxu0
    %v482 = vadd.f32 %v117, %v481
    %v483 = vpop.f32.mrb[0].mxu0
    %v484 = vadd.f32 %v113, %v483
    %v485 = vpop.f32.mrb[0].mxu0
    %v486 = vadd.f32 %v117, %v485
    %487 = vmatprep.mubr.bf16.mxu0 0
    %488 = vmatmul.mubr.bf16.gmra.mrb[0].mxu0 %v66
    %v489 = vpop.f32.mrb[0].mxu0
    %v490 = vadd.f32 %v113, %v489
    %v491 = vpop.f32.mrb[0].mxu0
    %v492 = vadd.f32 %v117, %v491
    %v493 = vpop.f32.mrb[0].mxu0
    %v494 = vadd.f32 %v113, %v493
    %v495 = vpop.f32.mrb[0].mxu0
    %v496 = vadd.f32 %v117, %v495
    %497 = vmatprep.mubr.bf16.mxu0 0
    %498 = vmatmul.mubr.bf16.gmra.mrb[0].mxu0 %v67
    %v499 = vpop.f32.mrb[0].mxu0
    %v500 = vadd.f32 %v113, %v499
    %v501 = vpop.f32.mrb[0].mxu0
    %v502 = vadd.f32 %v117, %v501
    %v503 = vpop.f32.mrb[0].mxu0
    %v504 = vadd.f32 %v113, %v503
    %v505 = vpop.f32.mrb[0].mxu0
    %v506 = vadd.f32 %v117, %v505
    %507 = vdwg.mxu0
    %508 = vst [vmem:[#allocation7] sm:$0xff] %v317
    %509 = vst [vmem:[#allocation7 + $0x8] sm:$0xff] %v319
    %510 = vst [vmem:[#allocation7 + $0x10] sm:$0xff] %v430
    %511 = vst [vmem:[#allocation7 + $0x18] sm:$0xff] %v432
    %512 = vst [vmem:[#allocation7 + $0x20] sm:$0xff] %v321
    %513 = vst [vmem:[#allocation7 + $0x28] sm:$0xff] %v323
    %514 = vst [vmem:[#allocation7 + $0x30] sm:$0xff] %v434
    %515 = vst [vmem:[#allocation7 + $0x38] sm:$0xff] %v436
    %516 = vst [vmem:[#allocation7 + $0x40] sm:$0xff] %v327
    %517 = vst [vmem:[#allocation7 + $0x48] sm:$0xff] %v329
    %518 = vst [vmem:[#allocation7 + $0x50] sm:$0xff] %v440
    %519 = vst [vmem:[#allocation7 + $0x58] sm:$0xff] %v442
    %520 = vst [vmem:[#allocation7 + $0x60] sm:$0xff] %v331
    %521 = vst [vmem:[#allocation7 + $0x68] sm:$0xff] %v333
    %522 = vst [vmem:[#allocation7 + $0x70] sm:$0xff] %v444
    %523 = vst [vmem:[#allocation7 + $0x78] sm:$0xff] %v446
    %524 = vst [vmem:[#allocation7 + $0x80] sm:$0xff] %v337
    %525 = vst [vmem:[#allocation7 + $0x88] sm:$0xff] %v339
    %526 = vst [vmem:[#allocation7 + $0x90] sm:$0xff] %v450
    %527 = vst [vmem:[#allocation7 + $0x98] sm:$0xff] %v452
    %528 = vst [vmem:[#allocation7 + $0xa0] sm:$0xff] %v341
    %529 = vst [vmem:[#allocation7 + $0xa8] sm:$0xff] %v343
    %530 = vst [vmem:[#allocation7 + $0xb0] sm:$0xff] %v454
    %531 = vst [vmem:[#allocation7 + $0xb8] sm:$0xff] %v456
    %532 = vst [vmem:[#allocation7 + $0xc0] sm:$0xff] %v347
    %533 = vst [vmem:[#allocation7 + $0xc8] sm:$0xff] %v349
    %534 = vst [vmem:[#allocation7 + $0xd0] sm:$0xff] %v460
    %535 = vst [vmem:[#allocation7 + $0xd8] sm:$0xff] %v462
    %536 = vst [vmem:[#allocation7 + $0xe0] sm:$0xff] %v351
    %537 = vst [vmem:[#allocation7 + $0xe8] sm:$0xff] %v353
    %538 = vst [vmem:[#allocation7 + $0xf0] sm:$0xff] %v464
    %539 = vst [vmem:[#allocation7 + $0xf8] sm:$0xff] %v466
    %540 = vst [vmem:[#allocation7 + $0x100] sm:$0xff] %v357
    %541 = vst [vmem:[#allocation7 + $0x108] sm:$0xff] %v359
    %542 = vst [vmem:[#allocation7 + $0x110] sm:$0xff] %v470
    %543 = vst [vmem:[#allocation7 + $0x118] sm:$0xff] %v472
    %544 = vst [vmem:[#allocation7 + $0x120] sm:$0xff] %v361
    %545 = vst [vmem:[#allocation7 + $0x128] sm:$0xff] %v363
    %546 = vst [vmem:[#allocation7 + $0x130] sm:$0xff] %v474
    %547 = vst [vmem:[#allocation7 + $0x138] sm:$0xff] %v476
    %548 = vst [vmem:[#allocation7 + $0x140] sm:$0xff] %v367
    %549 = vst [vmem:[#allocation7 + $0x148] sm:$0xff] %v369
    %550 = vst [vmem:[#allocation7 + $0x150] sm:$0xff] %v480
    %551 = vst [vmem:[#allocation7 + $0x158] sm:$0xff] %v482
    %552 = vst [vmem:[#allocation7 + $0x160] sm:$0xff] %v371
    %553 = vst [vmem:[#allocation7 + $0x168] sm:$0xff] %v373
    %554 = vst [vmem:[#allocation7 + $0x170] sm:$0xff] %v484
    %555 = vst [vmem:[#allocation7 + $0x178] sm:$0xff] %v486
    %556 = vst [vmem:[#allocation7 + $0x180] sm:$0xff] %v377
    %557 = vst [vmem:[#allocation7 + $0x188] sm:$0xff] %v379
    %558 = vst [vmem:[#allocation7 + $0x190] sm:$0xff] %v490
    %559 = vst [vmem:[#allocation7 + $0x198] sm:$0xff] %v492
    %560 = vst [vmem:[#allocation7 + $0x1a0] sm:$0xff] %v381
    %561 = vst [vmem:[#allocation7 + $0x1a8] sm:$0xff] %v383
    %562 = vst [vmem:[#allocation7 + $0x1b0] sm:$0xff] %v494
    %563 = vst [vmem:[#allocation7 + $0x1b8] sm:$0xff] %v496
    %564 = vst [vmem:[#allocation7 + $0x1c0] sm:$0xff] %v387
    %565 = vst [vmem:[#allocation7 + $0x1c8] sm:$0xff] %v389
    %566 = vst [vmem:[#allocation7 + $0x1d0] sm:$0xff] %v500
    %567 = vst [vmem:[#allocation7 + $0x1d8] sm:$0xff] %v502
    %568 = vst [vmem:[#allocation7 + $0x1e0] sm:$0xff] %v391
    %569 = vst [vmem:[#allocation7 + $0x1e8] sm:$0xff] %v393
    %570 = vst [vmem:[#allocation7 + $0x1f0] sm:$0xff] %v504
    %571 = vst [vmem:[#allocation7 + $0x1f8] sm:$0xff] %v506
    // Predicated region
    $region22: #{tpu_custom_call.1} parent=1 // pred_check
      _
    $region23: #{tpu_custom_call.1} parent=1 // pred_check_branch
      %573 = sbr.rel (0) target = $region25
    $region24: #{tpu_custom_call.1} parent=1 // pred_region
      %s575 = ssub.s32 8192, 8192
      %576 = vsyncadd [#allocation4], %s575
      %s577 = sshll.u32 [#allocation7], 4
      %s578 = int_to_ptr.vmem [resolvable:$true] %s577
      %583 = dma.vmem_to_hbm [thread:$0]  %s578, 8192, %s3, [#allocation4], 512, 512, 32
    $region25: #{tpu_custom_call.1} parent=1 // pred_fallthru
      _
    // Predicated region
    $region26: #{tpu_custom_call.1} parent=1 // pred_check
      _
    $region27: #{tpu_custom_call.1} parent=1 // pred_check_branch
      %585 = sbr.rel (0) target = $region29
    $region28: #{tpu_custom_call.1} parent=1 // pred_region
      %586 = dma.done [#allocation4], 8192
    $region29: #{tpu_custom_call.1} parent=1 // pred_fallthru
      _
    %587 = vsyncpa [#allocation3], 1
    %588 = vsyncpa [#allocation6], 1
    %589 = vsyncpa [#allocation4], 1

</llo_original>
